<compile_context>
chip_gen: v7x
topology: tpu7x:2x2x1
jax: 0.10.0
libtpu: 0.0.40
codegen_flags: <defaults>
</compile_context>

<pallas_src>
import jax
import jax.numpy as jnp
from jax.experimental import pallas as pl
from jax.experimental.pallas import tpu as pltpu


# ----------------------------------------------------------------------------
# Kernel:  o = x @ w + b   (x cast to bf16 in-register, w pre-cast bf16, f32 acc)
# Normalization is already folded into w / b by the wrapper.
# ----------------------------------------------------------------------------
def _linear_head_kernel(x_ref, w_ref, b_ref, o_ref, acc_ref):
    # x_ref:   (tm, tk)  raw input slab (native dtype; cast after load)
    # w_ref:   (tk, tn)  folded weight tile, bf16
    # b_ref:   (1,  tn)  folded bias tile, f32 (added only at finalize)
    # o_ref:   (tm, tn)  output tile, f32
    # acc_ref: (tm, tn)  f32 accumulator scratch (resident across the k axis)
    k = pl.program_id(2)

    @pl.when(k == 0)
    def _():
        acc_ref[...] = jnp.zeros_like(acc_ref)

    acc_ref[...] += jnp.dot(
        x_ref[...].astype(jnp.bfloat16),
        w_ref[...],
        preferred_element_type=jnp.float32,
    )

    @pl.when(k == pl.num_programs(2) - 1)
    def _():
        o_ref[...] = (acc_ref[...] + b_ref[...]).astype(o_ref.dtype)


# ----------------------------------------------------------------------------
# Tiling helpers
# ----------------------------------------------------------------------------
def _round_up(x, m):
    return ((x + m - 1) // m) * m


def _largest_divisor_tile(dim, max_tile, multiple):
    """Largest t <= max_tile with t % multiple == 0 and dim % t == 0.

    `dim` must already be a multiple of `multiple` (the wrapper pads it)."""
    t = min(max_tile, dim)
    t -= t % multiple
    while t > multiple and dim % t != 0:
        t -= multiple
    return max(t, multiple)


def fused_linear_head(x_flat, w_p, b_p):
    """x_flat @ w_p + b_p in one Pallas call. Shapes already padded/lane-dense."""
    n_pad, d_pad = x_flat.shape
    kp = w_p.shape[1]

    # Tile sizes. Budget (bf16, double-buffered x and w, f32 acc/out) at the max:
    #   2*(512*2048*2) + 2*(2048*128*2) + 512*128*4 + 2*(512*128*4) ~= 8 MiB,
    # under v5e's 16 MiB scoped-VMEM default and v7x's 32 MiB scoped limit.
    # For v7x megacore, prefer batch shapes where n_pad // tm >= 2 (and even);
    # with tiny batches the grid collapses to one step and one TC.
    tm = _largest_divisor_tile(n_pad, 512, 8)
    tn = _largest_divisor_tile(kp, 128, 128)
    tk = _largest_divisor_tile(d_pad, 2048, 128)

    grid = (n_pad // tm, kp // tn, d_pad // tk)

    return pl.pallas_call(
        _linear_head_kernel,
        out_shape=jax.ShapeDtypeStruct((n_pad, kp), jnp.float32),
        grid_spec=pltpu.PrefetchScalarGridSpec(
            num_scalar_prefetch=0,
            grid=grid,
            in_specs=[
                pl.BlockSpec((tm, tk), lambda i, j, k: (i, k)),   # x
                pl.BlockSpec((tk, tn), lambda i, j, k: (k, j)),   # folded w (bf16)
                pl.BlockSpec((1, tn), lambda i, j, k: (0, j)),    # folded b (f32)
            ],
            out_specs=pl.BlockSpec((tm, tn), lambda i, j, k: (i, j)),
            scratch_shapes=[pltpu.VMEM((tm, tn), jnp.float32)],
        ),
        compiler_params=pltpu.CompilerParams(
            dimension_semantics=("parallel", "parallel", "arbitrary"),
        ),
    )(x_flat, w_p, b_p)


# ----------------------------------------------------------------------------
# One-time parameter preparation (hoisted out of the forward path).
# Folds the per-channel normalization into the linear head and pads/casts.
# ----------------------------------------------------------------------------
def prepare_normalized_linear_params(mean, std, w, b, c, h, w_sp):
    d = c * h * w_sp
    k = w.shape[1]

    mean_c = mean.reshape(c).astype(jnp.float32)
    inv_std_c = 1.0 / std.reshape(c).astype(jnp.float32)

    # Per-feature vectors in flattened (c, h, w) order.
    mean_flat = jnp.repeat(mean_c, h * w_sp)        # (d,)
    inv_std_flat = jnp.repeat(inv_std_c, h * w_sp)  # (d,)

    w_f32 = w.astype(jnp.float32)
    # (x - mean) * inv_std @ w + b  ==  x @ (inv_std * w)  +  (b - (mean*inv_std) @ w)
    w_folded = inv_std_flat[:, None] * w_f32                               # (d, k)
    b_folded = (b.reshape(1, k).astype(jnp.float32)
                - (mean_flat * inv_std_flat)[None, :] @ w_f32)             # (1, k)

    # Pad D to a multiple of 128 and the class dim to 128 (lane-dense, unmasked
    # stores, full MXU output tiles). Weight cast to bf16 for the native MXU path.
    d_pad = _round_up(d, 128)
    kp = max(128, _round_up(k, 128))
    w_p = jnp.zeros((d_pad, kp), jnp.bfloat16).at[:d, :k].set(
        w_folded.astype(jnp.bfloat16))
    b_p = jnp.zeros((1, kp), jnp.float32).at[:, :k].set(b_folded)
    return w_p, b_p


# ----------------------------------------------------------------------------
# NormalizedModel forward (params already prepared/folded once).
# ----------------------------------------------------------------------------
def normalized_model_forward(x, w_p, b_p, num_classes):
    # TODO(synk): the wrapped `model` in the original module is arbitrary; it is
    # represented here as a deterministic flatten+linear classifier head.
    n, c, h, w_sp = x.shape
    d = c * h * w_sp
    d_pad = w_p.shape[0]

    # Flat (N, D) view in x's NATIVE dtype (cast to bf16 happens in-kernel, so
    # HBM reads stay at native width -- matters for uint8 image batches).
    x_flat = x.reshape(n, d)
    if d_pad != d:
        x_flat = jnp.pad(x_flat, ((0, 0), (0, d_pad - d)))

    # Pad the batch dim to a multiple of 8 (BlockSpec sublane constraint);
    # padded rows just produce bias rows and are sliced off below.
    tm = _largest_divisor_tile(_round_up(n, 8), 512, 8)
    n_pad = _round_up(n, tm)
    if n_pad != n:
        x_flat = jnp.pad(x_flat, ((0, n_pad - n), (0, 0)))

    out_padded = fused_linear_head(x_flat, w_p, b_p)
    return out_padded[:n, :num_classes]


if __name__ == "__main__":
    # Small shapes consistent with the module: NCHW image batch.
    N, C, H, W = 2, 4, 16, 16
    NUM_CLASSES = 10

    key = jax.random.PRNGKey(0)
    kx, kw, kb = jax.random.split(key, 3)

    x = jax.random.uniform(kx, (N, C, H, W), dtype=jnp.float32)

    # Deterministic per-channel normalization constants, viewed as (1, C, 1, 1).
    mean = jnp.linspace(0.4, 0.5, C, dtype=jnp.float32).reshape(1, C, 1, 1)
    std = jnp.linspace(0.2, 0.3, C, dtype=jnp.float32).reshape(1, C, 1, 1)

    # Deterministic synthetic linear-head parameters.
    D = C * H * W
    w = (jax.random.normal(kw, (D, NUM_CLASSES), dtype=jnp.float32)
         * (1.0 / jnp.sqrt(D)))
    b = jax.random.normal(kb, (1, NUM_CLASSES), dtype=jnp.float32) * 0.01

    # One-time prep (folding + padding + bf16 cast), hoisted out of forward.
    w_p, b_p = prepare_normalized_linear_params(mean, std, w, b, C, H, W)
    w_p, b_p = jax.block_until_ready((w_p, b_p))

    out = normalized_model_forward(x, w_p, b_p, NUM_CLASSES)
    out = jax.block_until_ready(out)

    # Pure-JAX f32 reference. Tolerance is loosened vs the previous all-f32
    # version because the matmul now runs with bf16 operands (f32 accumulate);
    # expected error is ~1e-2 absolute at these magnitudes.
    ref = ((x - mean) / std).reshape(N, -1) @ w + b
    assert out.shape == (N, NUM_CLASSES)
    assert jnp.allclose(out, ref, atol=5e-2, rtol=1e-2), "mismatch vs reference"

    print("KERNEL_OK")
</pallas_src>

<mosaic_0001>
module attributes {stable_mosaic.version = 11 : i64} {
  func.func @_linear_head_kernel(%arg0: i32, %arg1: i32, %arg2: i32, %arg3: memref<8x1024xf32, #tpu.memory_space<vmem>>, %arg4: memref<1024x128xbf16, #tpu.memory_space<vmem>>, %arg5: memref<1x128xf32, #tpu.memory_space<vmem>>, %arg6: memref<8x128xf32, #tpu.memory_space<vmem>>, %arg7: memref<8x128xf32, #tpu.memory_space<vmem>>) attributes {dimension_semantics = [#tpu.dimension_semantics<parallel>, #tpu.dimension_semantics<parallel>, #tpu.dimension_semantics<arbitrary>], iteration_bounds = array<i64: 1, 1, 1>, scalar_prefetch = 0 : i64, scratch_operands = 1 : i64, tpu.core_type = #tpu.core_type<tc>, window_params = [{transform_indices = @transform_0, window_bounds = array<i64: 8, 1024>}, {transform_indices = @transform_1, window_bounds = array<i64: 1024, 128>}, {transform_indices = @transform_2, window_bounds = array<i64: 1, 128>}, {transform_indices = @transform_3, window_bounds = array<i64: 8, 128>}]} {
    %c0_i32 = arith.constant 0 : i32
    %0 = arith.cmpi eq, %arg2, %c0_i32 : i32
    %1 = arith.extui %0 : i1 to i32
    %c0_i32_0 = arith.constant 0 : i32
    %2 = arith.cmpi ne, %1, %c0_i32_0 : i32
    scf.if %2 {
      %cst_10 = arith.constant 0.000000e+00 : f32
      %13 = vector.broadcast %cst_10 : f32 to vector<8x128xf32>
      %c0_11 = arith.constant 0 : index
      %c0_12 = arith.constant 0 : index
      %14 = vector.load %arg7[%c0_11, %c0_12] : memref<8x128xf32, #tpu.memory_space<vmem>>, vector<8x128xf32>
      tpu.vector_store %arg7[%c0_11, %c0_12], %13 {strides = array<i32>} : memref<8x128xf32, #tpu.memory_space<vmem>>, vector<8x128xf32>,
    } else {
    }
    %c0 = arith.constant 0 : index
    %c0_1 = arith.constant 0 : index
    %3 = vector.load %arg7[%c0, %c0_1] : memref<8x128xf32, #tpu.memory_space<vmem>>, vector<8x128xf32>
    %c0_2 = arith.constant 0 : index
    %c0_3 = arith.constant 0 : index
    %4 = vector.load %arg3[%c0_2, %c0_3] : memref<8x1024xf32, #tpu.memory_space<vmem>>, vector<8x1024xf32>
    %5 = arith.truncf %4 : vector<8x1024xf32> to vector<8x1024xbf16>
    %c0_4 = arith.constant 0 : index
    %c0_5 = arith.constant 0 : index
    %6 = vector.load %arg4[%c0_4, %c0_5] : memref<1024x128xbf16, #tpu.memory_space<vmem>>, vector<1024x128xbf16>
    %cst = arith.constant dense<0.000000e+00> : vector<8x128xf32>
    %7 = tpu.matmul %5, %6, %cst {dimension_numbers = #tpu.dot_dimension_numbers<[1], [0], [0], [1], [0, 0, 1, 1], [], []>} : vector<8x1024xbf16>, vector<1024x128xbf16>, vector<8x128xf32> -> vector<8x128xf32>
    %8 = arith.addf %3, %7 : vector<8x128xf32>
    %c0_6 = arith.constant 0 : index
    %c0_7 = arith.constant 0 : index
    %9 = vector.load %arg7[%c0_6, %c0_7] : memref<8x128xf32, #tpu.memory_space<vmem>>, vector<8x128xf32>
    tpu.vector_store %arg7[%c0_6, %c0_7], %8 {strides = array<i32>} : memref<8x128xf32, #tpu.memory_space<vmem>>, vector<8x128xf32>,
    %c0_i32_8 = arith.constant 0 : i32
    %10 = arith.cmpi eq, %arg2, %c0_i32_8 : i32
    %11 = arith.extui %10 : i1 to i32
    %c0_i32_9 = arith.constant 0 : i32
    %12 = arith.cmpi ne, %11, %c0_i32_9 : i32
    scf.if %12 {
      %c0_10 = arith.constant 0 : index
      %c0_11 = arith.constant 0 : index
      %13 = vector.load %arg7[%c0_10, %c0_11] : memref<8x128xf32, #tpu.memory_space<vmem>>, vector<8x128xf32>
      %c0_12 = arith.constant 0 : index
      %c0_13 = arith.constant 0 : index
      %14 = vector.load %arg5[%c0_12, %c0_13] : memref<1x128xf32, #tpu.memory_space<vmem>>, vector<1x128xf32>
      %15 = vector.broadcast %14 : vector<1x128xf32> to vector<8x128xf32>
      %16 = arith.addf %13, %15 : vector<8x128xf32>
      %c0_14 = arith.constant 0 : index
      %c0_15 = arith.constant 0 : index
      %17 = vector.load %arg6[%c0_14, %c0_15] : memref<8x128xf32, #tpu.memory_space<vmem>>, vector<8x128xf32>
      tpu.vector_store %arg6[%c0_14, %c0_15], %16 {strides = array<i32>} : memref<8x128xf32, #tpu.memory_space<vmem>>, vector<8x128xf32>,
    } else {
    }
    return
  }
  func.func @transform_0(%arg0: i32, %arg1: i32, %arg2: i32) -> (i32, i32) {
    %c0_i32 = arith.constant 0 : i32
    return %arg0, %arg2 : i32, i32
  }
  func.func @transform_1(%arg0: i32, %arg1: i32, %arg2: i32) -> (i32, i32) {
    %c0_i32 = arith.constant 0 : i32
    return %arg2, %arg1 : i32, i32
  }
  func.func @transform_2(%arg0: i32, %arg1: i32, %arg2: i32) -> (i32, i32) {
    %c0_i32 = arith.constant 0 : i32
    %c0_i32_0 = arith.constant 0 : i32
    return %c0_i32, %arg1 : i32, i32
  }
  func.func @transform_3(%arg0: i32, %arg1: i32, %arg2: i32) -> (i32, i32) {
    %c0_i32 = arith.constant 0 : i32
    return %arg0, %arg1 : i32, i32
  }
}

</mosaic_0001>

<llo_original>
// kernel: tpu_custom_call.1
$region0: #{tpu_custom_call.1}
  #allocation0 [shape = 'u32[]', space=smem, size = 0x4, offset = 0x4, fixed_abs, tag = 'smem constant byte address 0x4 - core index']
  #allocation1 [shape = 'u32[144,128]{1,0:T(1,128)}', space=vmem, size = 0x12000, scoped, tag = 'internal scratch']
  #allocation2 [shape = 'f32[8,128]{1,0:T(8,128)}', space=vmem, size = 0x1000, scoped, tag = 'scratch operand']
  %s0 = inlined_call_operand.hbm [shape: f32[8,1024], index: 0, kind: input, shape index: {}]
  %s1 = inlined_call_operand.hbm [shape: bf16[1024,128], index: 1, kind: input, shape index: {}]
  %s2 = inlined_call_operand.vmem [shape: f32[1,128], index: 2, kind: input, shape index: {}]
  %s3 = inlined_call_operand.hbm [shape: f32[8,128], index: 3, kind: output, shape index: {}]
  %s4 = sld [smem:[#allocation0]]
  $region38: #{tpu_custom_call.1} parent=0
    _
  %s6 = ssub.s32 1, %s4
  %s7 = scalar_select 0, %s6, %s4
  $region1: #{tpu_custom_call.1} parent=0
    #allocation3 [shape = 'u8[32768]{0}', space=vmem, size = 0x8000, scoped, tag = 'input window, operand 0, single buffered']
    #allocation4 [shape = 's32[1]{0}', space=sflag, size = 0x4, scoped, tag = 'scoped memory for tpu_custom_call.1']
    #allocation5 [shape = 's32[1]{0}', space=sflag, size = 0x4, scoped, tag = 'scoped memory for tpu_custom_call.1']
    #allocation6 [shape = 'u8[262144]{0}', space=vmem, size = 0x40000, scoped, tag = 'input window, operand 1, single buffered']
    #allocation7 [shape = 's32[1]{0}', space=sflag, size = 0x4, scoped, tag = 'scoped memory for tpu_custom_call.1']
    #allocation8 [shape = 'u8[4096]{0}', space=vmem, size = 0x1000, scoped, tag = 'output window, operand 0, single buffered']
    %8 = vsyncpa [#allocation4], 0
    %9 = vsyncpa [#allocation7], 0
    %10 = vsyncpa [#allocation5], 0
    // Predicated region
    $region2: #{tpu_custom_call.1} parent=1 // pred_check
      _
    $region3: #{tpu_custom_call.1} parent=1 // pred_check_branch
      %12 = sbr.rel (0) target = $region5
    $region4: #{tpu_custom_call.1} parent=1 // pred_region
      %s14 = ssub.s32 1024, 1024
      %15 = vsyncadd [#allocation4], %s14
      %s17 = sshll.u32 [#allocation3], 4
      %s18 = int_to_ptr.vmem [resolvable:$true] %s17
      %20 = dma.hbm_to_vmem [thread:$0]  %s0, 1024, %s18, [#allocation4]
    $region5: #{tpu_custom_call.1} parent=1 // pred_fallthru
      _
    // Predicated region
    $region6: #{tpu_custom_call.1} parent=1 // pred_check
      _
    $region7: #{tpu_custom_call.1} parent=1 // pred_check_branch
      %22 = sbr.rel (0) target = $region9
    $region8: #{tpu_custom_call.1} parent=1 // pred_region
      %s24 = ssub.s32 8192, 8192
      %25 = vsyncadd [#allocation7], %s24
      %s26 = sshll.u32 [#allocation6], 4
      %s27 = int_to_ptr.vmem [resolvable:$true] %s26
      %32 = dma.hbm_to_vmem [thread:$0]  %s1, 8192, %s27, [#allocation7], 64, 64, 4
    $region9: #{tpu_custom_call.1} parent=1 // pred_fallthru
      _
    // Predicated region
    $region10: #{tpu_custom_call.1} parent=1 // pred_check
      _
    $region11: #{tpu_custom_call.1} parent=1 // pred_check_branch
      %34 = sbr.rel (0) target = $region13
    $region12: #{tpu_custom_call.1} parent=1 // pred_region
      _
    $region13: #{tpu_custom_call.1} parent=1 // pred_fallthru
      _
    // Predicated region
    $region14: #{tpu_custom_call.1} parent=1 // pred_check
      _
    $region15: #{tpu_custom_call.1} parent=1 // pred_check_branch
      %36 = sbr.rel (0) target = $region17
    $region16: #{tpu_custom_call.1} parent=1 // pred_region
      %37 = dma.done [#allocation4], 1024
    $region17: #{tpu_custom_call.1} parent=1 // pred_fallthru
      _
    // Predicated region
    $region18: #{tpu_custom_call.1} parent=1 // pred_check
      _
    $region19: #{tpu_custom_call.1} parent=1 // pred_check_branch
      %39 = sbr.rel (0) target = $region21
    $region20: #{tpu_custom_call.1} parent=1 // pred_region
      %40 = dma.done [#allocation7], 8192
    $region21: #{tpu_custom_call.1} parent=1 // pred_fallthru
      _
    %p42 = scmp.eq.s32.totalorder 0, 0
    // Predicated region
    $region22: #{tpu_custom_call.1} parent=1 // pred_check
      %p43 = pneg %p42
    $region23: #{tpu_custom_call.1} parent=1 // pred_check_branch
      %45 = sbr.rel (%p43) target = $region25
    $region24: #{tpu_custom_call.1} parent=1 // pred_region
      %46 = vst [vmem:[#allocation2] sm:$0xff] 0.0
    $region25: #{tpu_custom_call.1} parent=1 // pred_fallthru
      _
    %v47 = vld [vmem:[#allocation2] sm:$0xff]
    %v48 = vld [vmem:[#allocation3] sm:$0xff]
    %v49 = vld [vmem:[#allocation3 + $0x8] sm:$0xff]
    %v50 = vld [vmem:[#allocation3 + $0x10] sm:$0xff]
    %v51 = vld [vmem:[#allocation3 + $0x18] sm:$0xff]
    %v52 = vld [vmem:[#allocation3 + $0x20] sm:$0xff]
    %v53 = vld [vmem:[#allocation3 + $0x28] sm:$0xff]
    %v54 = vld [vmem:[#allocation3 + $0x30] sm:$0xff]
    %v55 = vld [vmem:[#allocation3 + $0x38] sm:$0xff]
    %v56 = vpack.c.bf16 %v48, %v48
    %v57 = vpack.c.bf16 %v49, %v49
    %v58 = vpack.c.bf16 %v50, %v50
    %v59 = vpack.c.bf16 %v51, %v51
    %v60 = vpack.c.bf16 %v52, %v52
    %v61 = vpack.c.bf16 %v53, %v53
    %v62 = vpack.c.bf16 %v54, %v54
    %v63 = vpack.c.bf16 %v55, %v55
    %v64 = vld [vmem:[#allocation6] sm:$0xf]
    %v65 = vld [vmem:[#allocation6 + $0x4] sm:$0xf]
    %v66 = vld [vmem:[#allocation6 + $0x8] sm:$0xf]
    %v67 = vld [vmem:[#allocation6 + $0xc] sm:$0xf]
    %v68 = vld [vmem:[#allocation6 + $0x10] sm:$0xf]
    %v69 = vld [vmem:[#allocation6 + $0x14] sm:$0xf]
    %v70 = vld [vmem:[#allocation6 + $0x18] sm:$0xf]
    %v71 = vld [vmem:[#allocation6 + $0x1c] sm:$0xf]
    %v72 = vld [vmem:[#allocation6 + $0x20] sm:$0xf]
    %v73 = vld [vmem:[#allocation6 + $0x24] sm:$0xf]
    %v74 = vld [vmem:[#allocation6 + $0x28] sm:$0xf]
    %v75 = vld [vmem:[#allocation6 + $0x2c] sm:$0xf]
    %v76 = vld [vmem:[#allocation6 + $0x30] sm:$0xf]
    %v77 = vld [vmem:[#allocation6 + $0x34] sm:$0xf]
    %v78 = vld [vmem:[#allocation6 + $0x38] sm:$0xf]
    %v79 = vld [vmem:[#allocation6 + $0x3c] sm:$0xf]
    %v80 = vld [vmem:[#allocation6 + $0x40] sm:$0xf]
    %v81 = vld [vmem:[#allocation6 + $0x44] sm:$0xf]
    %v82 = vld [vmem:[#allocation6 + $0x48] sm:$0xf]
    %v83 = vld [vmem:[#allocation6 + $0x4c] sm:$0xf]
    %v84 = vld [vmem:[#allocation6 + $0x50] sm:$0xf]
    %v85 = vld [vmem:[#allocation6 + $0x54] sm:$0xf]
    %v86 = vld [vmem:[#allocation6 + $0x58] sm:$0xf]
    %v87 = vld [vmem:[#allocation6 + $0x5c] sm:$0xf]
    %v88 = vld [vmem:[#allocation6 + $0x60] sm:$0xf]
    %v89 = vld [vmem:[#allocation6 + $0x64] sm:$0xf]
    %v90 = vld [vmem:[#allocation6 + $0x68] sm:$0xf]
    %v91 = vld [vmem:[#allocation6 + $0x6c] sm:$0xf]
    %v92 = vld [vmem:[#allocation6 + $0x70] sm:$0xf]
    %v93 = vld [vmem:[#allocation6 + $0x74] sm:$0xf]
    %v94 = vld [vmem:[#allocation6 + $0x78] sm:$0xf]
    %v95 = vld [vmem:[#allocation6 + $0x7c] sm:$0xf]
    %v96 = vld [vmem:[#allocation6 + $0x80] sm:$0xf]
    %v97 = vld [vmem:[#allocation6 + $0x84] sm:$0xf]
    %v98 = vld [vmem:[#allocation6 + $0x88] sm:$0xf]
    %v99 = vld [vmem:[#allocation6 + $0x8c] sm:$0xf]
    %v100 = vld [vmem:[#allocation6 + $0x90] sm:$0xf]
    %v101 = vld [vmem:[#allocation6 + $0x94] sm:$0xf]
    %v102 = vld [vmem:[#allocation6 + $0x98] sm:$0xf]
    %v103 = vld [vmem:[#allocation6 + $0x9c] sm:$0xf]
    %v104 = vld [vmem:[#allocation6 + $0xa0] sm:$0xf]
    %v105 = vld [vmem:[#allocation6 + $0xa4] sm:$0xf]
    %v106 = vld [vmem:[#allocation6 + $0xa8] sm:$0xf]
    %v107 = vld [vmem:[#allocation6 + $0xac] sm:$0xf]
    %v108 = vld [vmem:[#allocation6 + $0xb0] sm:$0xf]
    %v109 = vld [vmem:[#allocation6 + $0xb4] sm:$0xf]
    %v110 = vld [vmem:[#allocation6 + $0xb8] sm:$0xf]
    %v111 = vld [vmem:[#allocation6 + $0xbc] sm:$0xf]
    %v112 = vld [vmem:[#allocation6 + $0xc0] sm:$0xf]
    %v113 = vld [vmem:[#allocation6 + $0xc4] sm:$0xf]
    %v114 = vld [vmem:[#allocation6 + $0xc8] sm:$0xf]
    %v115 = vld [vmem:[#allocation6 + $0xcc] sm:$0xf]
    %v116 = vld [vmem:[#allocation6 + $0xd0] sm:$0xf]
    %v117 = vld [vmem:[#allocation6 + $0xd4] sm:$0xf]
    %v118 = vld [vmem:[#allocation6 + $0xd8] sm:$0xf]
    %v119 = vld [vmem:[#allocation6 + $0xdc] sm:$0xf]
    %v120 = vld [vmem:[#allocation6 + $0xe0] sm:$0xf]
    %v121 = vld [vmem:[#allocation6 + $0xe4] sm:$0xf]
    %v122 = vld [vmem:[#allocation6 + $0xe8] sm:$0xf]
    %v123 = vld [vmem:[#allocation6 + $0xec] sm:$0xf]
    %v124 = vld [vmem:[#allocation6 + $0xf0] sm:$0xf]
    %v125 = vld [vmem:[#allocation6 + $0xf4] sm:$0xf]
    %v126 = vld [vmem:[#allocation6 + $0xf8] sm:$0xf]
    %v127 = vld [vmem:[#allocation6 + $0xfc] sm:$0xf]
    %v128 = vld [vmem:[#allocation6 + $0x100] sm:$0xf]
    %v129 = vld [vmem:[#allocation6 + $0x104] sm:$0xf]
    %v130 = vld [vmem:[#allocation6 + $0x108] sm:$0xf]
    %v131 = vld [vmem:[#allocation6 + $0x10c] sm:$0xf]
    %v132 = vld [vmem:[#allocation6 + $0x110] sm:$0xf]
    %v133 = vld [vmem:[#allocation6 + $0x114] sm:$0xf]
    %v134 = vld [vmem:[#allocation6 + $0x118] sm:$0xf]
    %v135 = vld [vmem:[#allocation6 + $0x11c] sm:$0xf]
    %v136 = vld [vmem:[#allocation6 + $0x120] sm:$0xf]
    %v137 = vld [vmem:[#allocation6 + $0x124] sm:$0xf]
    %v138 = vld [vmem:[#allocation6 + $0x128] sm:$0xf]
    %v139 = vld [vmem:[#allocation6 + $0x12c] sm:$0xf]
    %v140 = vld [vmem:[#allocation6 + $0x130] sm:$0xf]
    %v141 = vld [vmem:[#allocation6 + $0x134] sm:$0xf]
    %v142 = vld [vmem:[#allocation6 + $0x138] sm:$0xf]
    %v143 = vld [vmem:[#allocation6 + $0x13c] sm:$0xf]
    %v144 = vld [vmem:[#allocation6 + $0x140] sm:$0xf]
    %v145 = vld [vmem:[#allocation6 + $0x144] sm:$0xf]
    %v146 = vld [vmem:[#allocation6 + $0x148] sm:$0xf]
    %v147 = vld [vmem:[#allocation6 + $0x14c] sm:$0xf]
    %v148 = vld [vmem:[#allocation6 + $0x150] sm:$0xf]
    %v149 = vld [vmem:[#allocation6 + $0x154] sm:$0xf]
    %v150 = vld [vmem:[#allocation6 + $0x158] sm:$0xf]
    %v151 = vld [vmem:[#allocation6 + $0x15c] sm:$0xf]
    %v152 = vld [vmem:[#allocation6 + $0x160] sm:$0xf]
    %v153 = vld [vmem:[#allocation6 + $0x164] sm:$0xf]
    %v154 = vld [vmem:[#allocation6 + $0x168] sm:$0xf]
    %v155 = vld [vmem:[#allocation6 + $0x16c] sm:$0xf]
    %v156 = vld [vmem:[#allocation6 + $0x170] sm:$0xf]
    %v157 = vld [vmem:[#allocation6 + $0x174] sm:$0xf]
    %v158 = vld [vmem:[#allocation6 + $0x178] sm:$0xf]
    %v159 = vld [vmem:[#allocation6 + $0x17c] sm:$0xf]
    %v160 = vld [vmem:[#allocation6 + $0x180] sm:$0xf]
    %v161 = vld [vmem:[#allocation6 + $0x184] sm:$0xf]
    %v162 = vld [vmem:[#allocation6 + $0x188] sm:$0xf]
    %v163 = vld [vmem:[#allocation6 + $0x18c] sm:$0xf]
    %v164 = vld [vmem:[#allocation6 + $0x190] sm:$0xf]
    %v165 = vld [vmem:[#allocation6 + $0x194] sm:$0xf]
    %v166 = vld [vmem:[#allocation6 + $0x198] sm:$0xf]
    %v167 = vld [vmem:[#allocation6 + $0x19c] sm:$0xf]
    %v168 = vld [vmem:[#allocation6 + $0x1a0] sm:$0xf]
    %v169 = vld [vmem:[#allocation6 + $0x1a4] sm:$0xf]
    %v170 = vld [vmem:[#allocation6 + $0x1a8] sm:$0xf]
    %v171 = vld [vmem:[#allocation6 + $0x1ac] sm:$0xf]
    %v172 = vld [vmem:[#allocation6 + $0x1b0] sm:$0xf]
    %v173 = vld [vmem:[#allocation6 + $0x1b4] sm:$0xf]
    %v174 = vld [vmem:[#allocation6 + $0x1b8] sm:$0xf]
    %v175 = vld [vmem:[#allocation6 + $0x1bc] sm:$0xf]
    %v176 = vld [vmem:[#allocation6 + $0x1c0] sm:$0xf]
    %v177 = vld [vmem:[#allocation6 + $0x1c4] sm:$0xf]
    %v178 = vld [vmem:[#allocation6 + $0x1c8] sm:$0xf]
    %v179 = vld [vmem:[#allocation6 + $0x1cc] sm:$0xf]
    %v180 = vld [vmem:[#allocation6 + $0x1d0] sm:$0xf]
    %v181 = vld [vmem:[#allocation6 + $0x1d4] sm:$0xf]
    %v182 = vld [vmem:[#allocation6 + $0x1d8] sm:$0xf]
    %v183 = vld [vmem:[#allocation6 + $0x1dc] sm:$0xf]
    %v184 = vld [vmem:[#allocation6 + $0x1e0] sm:$0xf]
    %v185 = vld [vmem:[#allocation6 + $0x1e4] sm:$0xf]
    %v186 = vld [vmem:[#allocation6 + $0x1e8] sm:$0xf]
    %v187 = vld [vmem:[#allocation6 + $0x1ec] sm:$0xf]
    %v188 = vld [vmem:[#allocation6 + $0x1f0] sm:$0xf]
    %v189 = vld [vmem:[#allocation6 + $0x1f4] sm:$0xf]
    %v190 = vld [vmem:[#allocation6 + $0x1f8] sm:$0xf]
    %v191 = vld [vmem:[#allocation6 + $0x1fc] sm:$0xf]
    %v320 = vunpack.c.l.b16 %v64
    %v321 = vunpack.c.l.b16 %v65
    %v322 = vunpack.c.l.b16 %v66
    %v323 = vunpack.c.l.b16 %v67
    %v324 = vunpack.c.l.b16 %v68
    %v325 = vunpack.c.l.b16 %v69
    %v326 = vunpack.c.l.b16 %v70
    %v327 = vunpack.c.l.b16 %v71
    %v328 = vunpack.c.l.b16 %v72
    %v329 = vunpack.c.l.b16 %v73
    %v330 = vunpack.c.l.b16 %v74
    %v331 = vunpack.c.l.b16 %v75
    %v332 = vunpack.c.l.b16 %v76
    %v333 = vunpack.c.l.b16 %v77
    %v334 = vunpack.c.l.b16 %v78
    %v335 = vunpack.c.l.b16 %v79
    %v336 = vunpack.c.l.b16 %v80
    %v337 = vunpack.c.l.b16 %v81
    %v338 = vunpack.c.l.b16 %v82
    %v339 = vunpack.c.l.b16 %v83
    %v340 = vunpack.c.l.b16 %v84
    %v341 = vunpack.c.l.b16 %v85
    %v342 = vunpack.c.l.b16 %v86
    %v343 = vunpack.c.l.b16 %v87
    %v344 = vunpack.c.l.b16 %v88
    %v345 = vunpack.c.l.b16 %v89
    %v346 = vunpack.c.l.b16 %v90
    %v347 = vunpack.c.l.b16 %v91
    %v348 = vunpack.c.l.b16 %v92
    %v349 = vunpack.c.l.b16 %v93
    %v350 = vunpack.c.l.b16 %v94
    %v351 = vunpack.c.l.b16 %v95
    %v352 = vunpack.c.l.b16 %v96
    %v353 = vunpack.c.l.b16 %v97
    %v354 = vunpack.c.l.b16 %v98
    %v355 = vunpack.c.l.b16 %v99
    %v356 = vunpack.c.l.b16 %v100
    %v357 = vunpack.c.l.b16 %v101
    %v358 = vunpack.c.l.b16 %v102
    %v359 = vunpack.c.l.b16 %v103
    %v360 = vunpack.c.l.b16 %v104
    %v361 = vunpack.c.l.b16 %v105
    %v362 = vunpack.c.l.b16 %v106
    %v363 = vunpack.c.l.b16 %v107
    %v364 = vunpack.c.l.b16 %v108
    %v365 = vunpack.c.l.b16 %v109
    %v366 = vunpack.c.l.b16 %v110
    %v367 = vunpack.c.l.b16 %v111
    %v368 = vunpack.c.l.b16 %v112
    %v369 = vunpack.c.l.b16 %v113
    %v370 = vunpack.c.l.b16 %v114
    %v371 = vunpack.c.l.b16 %v115
    %v372 = vunpack.c.l.b16 %v116
    %v373 = vunpack.c.l.b16 %v117
    %v374 = vunpack.c.l.b16 %v118
    %v375 = vunpack.c.l.b16 %v119
    %v376 = vunpack.c.l.b16 %v120
    %v377 = vunpack.c.l.b16 %v121
    %v378 = vunpack.c.l.b16 %v122
    %v379 = vunpack.c.l.b16 %v123
    %v380 = vunpack.c.l.b16 %v124
    %v381 = vunpack.c.l.b16 %v125
    %v382 = vunpack.c.l.b16 %v126
    %v383 = vunpack.c.l.b16 %v127
    %v384 = vunpack.c.l.b16 %v128
    %v385 = vunpack.c.l.b16 %v129
    %v386 = vunpack.c.l.b16 %v130
    %v387 = vunpack.c.l.b16 %v131
    %v388 = vunpack.c.l.b16 %v132
    %v389 = vunpack.c.l.b16 %v133
    %v390 = vunpack.c.l.b16 %v134
    %v391 = vunpack.c.l.b16 %v135
    %v392 = vunpack.c.l.b16 %v136
    %v393 = vunpack.c.l.b16 %v137
    %v394 = vunpack.c.l.b16 %v138
    %v395 = vunpack.c.l.b16 %v139
    %v396 = vunpack.c.l.b16 %v140
    %v397 = vunpack.c.l.b16 %v141
    %v398 = vunpack.c.l.b16 %v142
    %v399 = vunpack.c.l.b16 %v143
    %v400 = vunpack.c.l.b16 %v144
    %v401 = vunpack.c.l.b16 %v145
    %v402 = vunpack.c.l.b16 %v146
    %v403 = vunpack.c.l.b16 %v147
    %v404 = vunpack.c.l.b16 %v148
    %v405 = vunpack.c.l.b16 %v149
    %v406 = vunpack.c.l.b16 %v150
    %v407 = vunpack.c.l.b16 %v151
    %v408 = vunpack.c.l.b16 %v152
    %v409 = vunpack.c.l.b16 %v153
    %v410 = vunpack.c.l.b16 %v154
    %v411 = vunpack.c.l.b16 %v155
    %v412 = vunpack.c.l.b16 %v156
    %v413 = vunpack.c.l.b16 %v157
    %v414 = vunpack.c.l.b16 %v158
    %v415 = vunpack.c.l.b16 %v159
    %v416 = vunpack.c.l.b16 %v160
    %v417 = vunpack.c.l.b16 %v161
    %v418 = vunpack.c.l.b16 %v162
    %v419 = vunpack.c.l.b16 %v163
    %v420 = vunpack.c.l.b16 %v164
    %v421 = vunpack.c.l.b16 %v165
    %v422 = vunpack.c.l.b16 %v166
    %v423 = vunpack.c.l.b16 %v167
    %v424 = vunpack.c.l.b16 %v168
    %v425 = vunpack.c.l.b16 %v169
    %v426 = vunpack.c.l.b16 %v170
    %v427 = vunpack.c.l.b16 %v171
    %v428 = vunpack.c.l.b16 %v172
    %v429 = vunpack.c.l.b16 %v173
    %v430 = vunpack.c.l.b16 %v174
    %v431 = vunpack.c.l.b16 %v175
    %v432 = vunpack.c.l.b16 %v176
    %v433 = vunpack.c.l.b16 %v177
    %v434 = vunpack.c.l.b16 %v178
    %v435 = vunpack.c.l.b16 %v179
    %v436 = vunpack.c.l.b16 %v180
    %v437 = vunpack.c.l.b16 %v181
    %v438 = vunpack.c.l.b16 %v182
    %v439 = vunpack.c.l.b16 %v183
    %v440 = vunpack.c.l.b16 %v184
    %v441 = vunpack.c.l.b16 %v185
    %v442 = vunpack.c.l.b16 %v186
    %v443 = vunpack.c.l.b16 %v187
    %v444 = vunpack.c.l.b16 %v188
    %v445 = vunpack.c.l.b16 %v189
    %v446 = vunpack.c.l.b16 %v190
    %v447 = vunpack.c.l.b16 %v191
    %v448 = vpack.c.b16 %v321, %v320
    %v449 = vpack.c.b16 %v323, %v322
    %v450 = vpack.c.b16 %v325, %v324
    %v451 = vpack.c.b16 %v327, %v326
    %v452 = vpack.c.b16 %v329, %v328
    %v453 = vpack.c.b16 %v331, %v330
    %v454 = vpack.c.b16 %v333, %v332
    %v455 = vpack.c.b16 %v335, %v334
    %v456 = vpack.c.b16 %v337, %v336
    %v457 = vpack.c.b16 %v339, %v338
    %v458 = vpack.c.b16 %v341, %v340
    %v459 = vpack.c.b16 %v343, %v342
    %v460 = vpack.c.b16 %v345, %v344
    %v461 = vpack.c.b16 %v347, %v346
    %v462 = vpack.c.b16 %v349, %v348
    %v463 = vpack.c.b16 %v351, %v350
    %v464 = vpack.c.b16 %v353, %v352
    %v465 = vpack.c.b16 %v355, %v354
    %v466 = vpack.c.b16 %v357, %v356
    %v467 = vpack.c.b16 %v359, %v358
    %v468 = vpack.c.b16 %v361, %v360
    %v469 = vpack.c.b16 %v363, %v362
    %v470 = vpack.c.b16 %v365, %v364
    %v471 = vpack.c.b16 %v367, %v366
    %v472 = vpack.c.b16 %v369, %v368
    %v473 = vpack.c.b16 %v371, %v370
    %v474 = vpack.c.b16 %v373, %v372
    %v475 = vpack.c.b16 %v375, %v374
    %v476 = vpack.c.b16 %v377, %v376
    %v477 = vpack.c.b16 %v379, %v378
    %v478 = vpack.c.b16 %v381, %v380
    %v479 = vpack.c.b16 %v383, %v382
    %v480 = vpack.c.b16 %v385, %v384
    %v481 = vpack.c.b16 %v387, %v386
    %v482 = vpack.c.b16 %v389, %v388
    %v483 = vpack.c.b16 %v391, %v390
    %v484 = vpack.c.b16 %v393, %v392
    %v485 = vpack.c.b16 %v395, %v394
    %v486 = vpack.c.b16 %v397, %v396
    %v487 = vpack.c.b16 %v399, %v398
    %v488 = vpack.c.b16 %v401, %v400
    %v489 = vpack.c.b16 %v403, %v402
    %v490 = vpack.c.b16 %v405, %v404
    %v491 = vpack.c.b16 %v407, %v406
    %v492 = vpack.c.b16 %v409, %v408
    %v493 = vpack.c.b16 %v411, %v410
    %v494 = vpack.c.b16 %v413, %v412
    %v495 = vpack.c.b16 %v415, %v414
    %v496 = vpack.c.b16 %v417, %v416
    %v497 = vpack.c.b16 %v419, %v418
    %v498 = vpack.c.b16 %v421, %v420
    %v499 = vpack.c.b16 %v423, %v422
    %v500 = vpack.c.b16 %v425, %v424
    %v501 = vpack.c.b16 %v427, %v426
    %v502 = vpack.c.b16 %v429, %v428
    %v503 = vpack.c.b16 %v431, %v430
    %v504 = vpack.c.b16 %v433, %v432
    %v505 = vpack.c.b16 %v435, %v434
    %v506 = vpack.c.b16 %v437, %v436
    %v507 = vpack.c.b16 %v439, %v438
    %v508 = vpack.c.b16 %v441, %v440
    %v509 = vpack.c.b16 %v443, %v442
    %v510 = vpack.c.b16 %v445, %v444
    %v511 = vpack.c.b16 %v447, %v446
    %576 = vmatprep.subr.bf16.mxu0 0
    %577 = vmatpush1.bf16.msra.mxu0 %v448
    %578 = vmatprep.subr.bf16.mxu0 0
    %579 = vmatpush1.bf16.msra.mxu0 %v449
    %580 = vmatprep.subr.bf16.mxu0 0
    %581 = vmatpush1.bf16.msra.mxu0 %v450
    %582 = vmatprep.subr.bf16.mxu0 0
    %583 = vmatpush1.bf16.msra.mxu0 %v451
    %584 = vmatprep.subr.bf16.mxu0 0
    %585 = vmatpush1.bf16.msra.mxu0 %v452
    %586 = vmatprep.subr.bf16.mxu0 0
    %587 = vmatpush1.bf16.msra.mxu0 %v453
    %588 = vmatprep.subr.bf16.mxu0 0
    %589 = vmatpush1.bf16.msra.mxu0 %v454
    %590 = vmatprep.subr.bf16.mxu0 0
    %591 = vmatpush1.bf16.msra.mxu0 %v455
    %592 = vmatprep.subr.bf16.mxu0 0
    %593 = vmatpush1.bf16.msra.mxu0 %v456
    %594 = vmatprep.subr.bf16.mxu0 0
    %595 = vmatpush1.bf16.msra.mxu0 %v457
    %596 = vmatprep.subr.bf16.mxu0 0
    %597 = vmatpush1.bf16.msra.mxu0 %v458
    %598 = vmatprep.subr.bf16.mxu0 0
    %599 = vmatpush1.bf16.msra.mxu0 %v459
    %600 = vmatprep.subr.bf16.mxu0 0
    %601 = vmatpush1.bf16.msra.mxu0 %v460
    %602 = vmatprep.subr.bf16.mxu0 0
    %603 = vmatpush1.bf16.msra.mxu0 %v461
    %604 = vmatprep.subr.bf16.mxu0 0
    %605 = vmatpush1.bf16.msra.mxu0 %v462
    %606 = vmatprep.subr.bf16.mxu0 0
    %607 = vmatpush1.bf16.msra.mxu0 %v463
    %608 = vmatprep.mubr.bf16.mxu0 %v57
    %609 = vmatmul.mubr.bf16.gmra.mrb[0].mxu0 %v56
    %v610 = vpop.f32.mrb[0].mxu0
    %v611 = vadd.f32 0.0, %v610
    %v612 = vpop.f32.mrb[0].mxu0
    %v613 = vpop.f32.mrb[0].mxu0
    %v614 = vpop.f32.mrb[0].mxu0
    %615 = vdwg.mxu0
    %616 = vmatprep.subr.bf16.mxu0 0
    %617 = vmatpush1.bf16.msra.mxu0 %v464
    %618 = vmatprep.subr.bf16.mxu0 0
    %619 = vmatpush1.bf16.msra.mxu0 %v465
    %620 = vmatprep.subr.bf16.mxu0 0
    %621 = vmatpush1.bf16.msra.mxu0 %v466
    %622 = vmatprep.subr.bf16.mxu0 0
    %623 = vmatpush1.bf16.msra.mxu0 %v467
    %624 = vmatprep.subr.bf16.mxu0 0
    %625 = vmatpush1.bf16.msra.mxu0 %v468
    %626 = vmatprep.subr.bf16.mxu0 0
    %627 = vmatpush1.bf16.msra.mxu0 %v469
    %628 = vmatprep.subr.bf16.mxu0 0
    %629 = vmatpush1.bf16.msra.mxu0 %v470
    %630 = vmatprep.subr.bf16.mxu0 0
    %631 = vmatpush1.bf16.msra.mxu0 %v471
    %632 = vmatprep.subr.bf16.mxu0 0
    %633 = vmatpush1.bf16.msra.mxu0 %v472
    %634 = vmatprep.subr.bf16.mxu0 0
    %635 = vmatpush1.bf16.msra.mxu0 %v473
    %636 = vmatprep.subr.bf16.mxu0 0
    %637 = vmatpush1.bf16.msra.mxu0 %v474
    %638 = vmatprep.subr.bf16.mxu0 0
    %639 = vmatpush1.bf16.msra.mxu0 %v475
    %640 = vmatprep.subr.bf16.mxu0 0
    %641 = vmatpush1.bf16.msra.mxu0 %v476
    %642 = vmatprep.subr.bf16.mxu0 0
    %643 = vmatpush1.bf16.msra.mxu0 %v477
    %644 = vmatprep.subr.bf16.mxu0 0
    %645 = vmatpush1.bf16.msra.mxu0 %v478
    %646 = vmatprep.subr.bf16.mxu0 0
    %647 = vmatpush1.bf16.msra.mxu0 %v479
    %648 = vmatprep.mubr.bf16.mxu0 %v59
    %649 = vmatmul.mubr.bf16.gmra.mrb[0].mxu0 %v58
    %v650 = vpop.f32.mrb[0].mxu0
    %v651 = vadd.f32 %v611, %v650
    %v652 = vpop.f32.mrb[0].mxu0
    %v653 = vpop.f32.mrb[0].mxu0
    %v654 = vpop.f32.mrb[0].mxu0
    %655 = vdwg.mxu0
    %656 = vmatprep.subr.bf16.mxu0 0
    %657 = vmatpush1.bf16.msra.mxu0 %v480
    %658 = vmatprep.subr.bf16.mxu0 0
    %659 = vmatpush1.bf16.msra.mxu0 %v481
    %660 = vmatprep.subr.bf16.mxu0 0
    %661 = vmatpush1.bf16.msra.mxu0 %v482
    %662 = vmatprep.subr.bf16.mxu0 0
    %663 = vmatpush1.bf16.msra.mxu0 %v483
    %664 = vmatprep.subr.bf16.mxu0 0
    %665 = vmatpush1.bf16.msra.mxu0 %v484
    %666 = vmatprep.subr.bf16.mxu0 0
    %667 = vmatpush1.bf16.msra.mxu0 %v485
    %668 = vmatprep.subr.bf16.mxu0 0
    %669 = vmatpush1.bf16.msra.mxu0 %v486
    %670 = vmatprep.subr.bf16.mxu0 0
    %671 = vmatpush1.bf16.msra.mxu0 %v487
    %672 = vmatprep.subr.bf16.mxu0 0
    %673 = vmatpush1.bf16.msra.mxu0 %v488
    %674 = vmatprep.subr.bf16.mxu0 0
    %675 = vmatpush1.bf16.msra.mxu0 %v489
    %676 = vmatprep.subr.bf16.mxu0 0
    %677 = vmatpush1.bf16.msra.mxu0 %v490
    %678 = vmatprep.subr.bf16.mxu0 0
    %679 = vmatpush1.bf16.msra.mxu0 %v491
    %680 = vmatprep.subr.bf16.mxu0 0
    %681 = vmatpush1.bf16.msra.mxu0 %v492
    %682 = vmatprep.subr.bf16.mxu0 0
    %683 = vmatpush1.bf16.msra.mxu0 %v493
    %684 = vmatprep.subr.bf16.mxu0 0
    %685 = vmatpush1.bf16.msra.mxu0 %v494
    %686 = vmatprep.subr.bf16.mxu0 0
    %687 = vmatpush1.bf16.msra.mxu0 %v495
    %688 = vmatprep.mubr.bf16.mxu0 %v61
    %689 = vmatmul.mubr.bf16.gmra.mrb[0].mxu0 %v60
    %v690 = vpop.f32.mrb[0].mxu0
    %v691 = vadd.f32 %v651, %v690
    %v692 = vpop.f32.mrb[0].mxu0
    %v693 = vpop.f32.mrb[0].mxu0
    %v694 = vpop.f32.mrb[0].mxu0
    %695 = vdwg.mxu0
    %696 = vmatprep.subr.bf16.mxu0 0
    %697 = vmatpush1.bf16.msra.mxu0 %v496
    %698 = vmatprep.subr.bf16.mxu0 0
    %699 = vmatpush1.bf16.msra.mxu0 %v497
    %700 = vmatprep.subr.bf16.mxu0 0
    %701 = vmatpush1.bf16.msra.mxu0 %v498
    %702 = vmatprep.subr.bf16.mxu0 0
    %703 = vmatpush1.bf16.msra.mxu0 %v499
    %704 = vmatprep.subr.bf16.mxu0 0
    %705 = vmatpush1.bf16.msra.mxu0 %v500
    %706 = vmatprep.subr.bf16.mxu0 0
    %707 = vmatpush1.bf16.msra.mxu0 %v501
    %708 = vmatprep.subr.bf16.mxu0 0
    %709 = vmatpush1.bf16.msra.mxu0 %v502
    %710 = vmatprep.subr.bf16.mxu0 0
    %711 = vmatpush1.bf16.msra.mxu0 %v503
    %712 = vmatprep.subr.bf16.mxu0 0
    %713 = vmatpush1.bf16.msra.mxu0 %v504
    %714 = vmatprep.subr.bf16.mxu0 0
    %715 = vmatpush1.bf16.msra.mxu0 %v505
    %716 = vmatprep.subr.bf16.mxu0 0
    %717 = vmatpush1.bf16.msra.mxu0 %v506
    %718 = vmatprep.subr.bf16.mxu0 0
    %719 = vmatpush1.bf16.msra.mxu0 %v507
    %720 = vmatprep.subr.bf16.mxu0 0
    %721 = vmatpush1.bf16.msra.mxu0 %v508
    %722 = vmatprep.subr.bf16.mxu0 0
    %723 = vmatpush1.bf16.msra.mxu0 %v509
    %724 = vmatprep.subr.bf16.mxu0 0
    %725 = vmatpush1.bf16.msra.mxu0 %v510
    %726 = vmatprep.subr.bf16.mxu0 0
    %727 = vmatpush1.bf16.msra.mxu0 %v511
    %728 = vmatprep.mubr.bf16.mxu0 %v63
    %729 = vmatmul.mubr.bf16.gmra.mrb[0].mxu0 %v62
    %v730 = vpop.f32.mrb[0].mxu0
    %v731 = vadd.f32 %v691, %v730
    %v732 = vpop.f32.mrb[0].mxu0
    %v733 = vpop.f32.mrb[0].mxu0
    %v734 = vpop.f32.mrb[0].mxu0
    %735 = vdwg.mxu0
    %v736 = vadd.f32 %v47, %v731
    %737 = vst [vmem:[#allocation2] sm:$0xff] %v736
    // Predicated region
    $region26: #{tpu_custom_call.1} parent=1 // pred_check
      %p738 = pneg %p42
    $region27: #{tpu_custom_call.1} parent=1 // pred_check_branch
      %740 = sbr.rel (%p738) target = $region29
    $region28: #{tpu_custom_call.1} parent=1 // pred_region
      %v741 = vld [vmem:[#allocation2] sm:$0xff]
      %v742 = vld [vmem:[%s2] sm:$0x1]
      %v744 = vlaneseq
      %v745 = vshrl.u32 %v744, 7
      %v746 = vsub.s32 0, %v745
      %v747 = vrot.slane %v742, %v746
      %v749 = vadd.f32 %v741, %v747
      %750 = vst [vmem:[#allocation8] sm:$0xff] %v749
    $region29: #{tpu_custom_call.1} parent=1 // pred_fallthru
      _
    // Predicated region
    $region30: #{tpu_custom_call.1} parent=1 // pred_check
      _
    $region31: #{tpu_custom_call.1} parent=1 // pred_check_branch
      %752 = sbr.rel (0) target = $region33
    $region32: #{tpu_custom_call.1} parent=1 // pred_region
      %s754 = ssub.s32 128, 128
      %755 = vsyncadd [#allocation5], %s754
      %s757 = sshll.u32 [#allocation8], 4
      %s758 = int_to_ptr.vmem [resolvable:$true] %s757
      %760 = dma.vmem_to_hbm [thread:$0]  %s758, 128, %s3, [#allocation5]
    $region33: #{tpu_custom_call.1} parent=1 // pred_fallthru
      _
    // Predicated region
    $region34: #{tpu_custom_call.1} parent=1 // pred_check
      _
    $region35: #{tpu_custom_call.1} parent=1 // pred_check_branch
      %762 = sbr.rel (0) target = $region37
    $region36: #{tpu_custom_call.1} parent=1 // pred_region
      %763 = dma.done [#allocation5], 128
    $region37: #{tpu_custom_call.1} parent=1 // pred_fallthru
      _
    %764 = vsyncpa [#allocation4], 1
    %765 = vsyncpa [#allocation7], 1
    %766 = vsyncpa [#allocation5], 1

</llo_original>
